<compile_context>
chip_gen: v7x
topology: tpu7x:2x2x1
jax: 0.10.0
libtpu: 0.0.40
codegen_flags: <defaults>
</compile_context>

<pallas_src>
import jax
import jax.numpy as jnp
from jax.experimental import pallas as pl
from jax.experimental.pallas import tpu as pltpu

C_OUT = 8      # out_channels
K = 10         # conv kernel size
STRIDE = 2     # conv stride
POOL = 3       # max-pool kernel == stride


def _round_up(a, b):
    return (a + b - 1) // b * b


def _cdiv(a, b):
    return (a + b - 1) // b


def _brain_decode_kernel(x_ref, wh_ref, wl_ref, b_ref, o_ref):
    """One (row-block, feature-block) tile of conv -> relu -> maxpool.

    x_ref : (TN, L)        f32   input rows
    wh_ref: (L, POOL*FP)   bf16  hi half of the folded conv+pool weight
    wl_ref: (L, POOL*FP)   bf16  lo half
    b_ref : (1, FP)        f32   bias (channel-major, zero padded)
    o_ref : (TN, FT)       f32   pooled output features (FT <= FP)
    """
    FT = o_ref.shape[-1]
    FP = wh_ref.shape[-1] // POOL

    x = x_ref[...]
    # bf16_3x split: x == x_hi + x_lo to ~2^-18 relative; same for W.
    x_hi = x.astype(jnp.bfloat16)
    x_lo = (x - x_hi.astype(jnp.float32)).astype(jnp.bfloat16)
    w_hi = wh_ref[...]
    w_lo = wl_ref[...]

    # Three native single-pass bf16 MXU matmuls with f32 accumulation
    # (Precision.HIGH numerics at half of HIGHEST's MXU passes).
    conv = jnp.dot(x_hi, w_hi, preferred_element_type=jnp.float32)
    conv += jnp.dot(x_hi, w_lo, preferred_element_type=jnp.float32)
    conv += jnp.dot(x_lo, w_hi, preferred_element_type=jnp.float32)  # (TN, POOL*FP)

    # MaxPool1d(3, stride=3): three vreg-aligned FP-wide slabs -> 2 VPU maxes.
    pooled = jnp.maximum(jnp.maximum(conv[:, 0:FP], conv[:, FP:2 * FP]),
                         conv[:, 2 * FP:3 * FP])

    # relu(x + b) is monotone in x => bias/ReLU commute with the max.
    res = jnp.maximum(pooled + b_ref[...], 0.0)
    o_ref[...] = res[:, :FT]


def _vmem_capacity_bytes():
    """Best-effort physical-VMEM query; conservative (v7x-sized) fallback."""
    try:
        cap = int(pltpu.get_tpu_info().vmem_capacity_bytes)
        if cap > 0:
            return cap
    except Exception:
        pass
    try:
        kind = jax.devices()[0].device_kind.lower()
        if ("v5" in kind) or ("v6" in kind):
            return 128 * 1024 * 1024
    except Exception:
        pass
    return 64 * 1024 * 1024


def brain_decode_conv(x, weight, bias):
    """x: (B, C, L) f32; weight: (C_OUT, 1, K) f32; bias: (C_OUT,) f32."""
    B, C, L = x.shape
    N = B * C
    L1 = (L - K) // STRIDE + 1
    L2 = (L1 - POOL) // POOL + 1
    assert L1 >= 1 and L2 >= 1, "input too short for conv/pool"
    F = C_OUT * L2

    xf = x.reshape(N, L).astype(jnp.float32)
    w2 = weight.reshape(C_OUT, K).astype(jnp.float32)
    b1 = bias.astype(jnp.float32)

    # ---- generation-aware VMEM budget --------------------------------------
    phys_vmem = _vmem_capacity_bytes()
    if phys_vmem >= 100 * 1024 * 1024:        # v5e / v6e: 128 MiB physical VMEM
        ws_budget = 40 * 1024 * 1024
        vmem_limit = 96 * 1024 * 1024
    else:                                     # v7x: 64 MiB physical VMEM
        ws_budget = 14 * 1024 * 1024
        vmem_limit = 32 * 1024 * 1024

    # ---- feature-dimension tiling ------------------------------------------
    # Weight block = (L, POOL*FP) in two bf16 halves, double-buffered:
    #   bytes(FT) = 2(halves) * 2(buffers) * L * POOL * round_up(FT,128) * 2B
    def w_block_bytes(ft):
        return 8 * L * POOL * _round_up(ft, 128)

    FT = F
    if w_block_bytes(FT) > ws_budget // 3:
        FT = max(128, (ws_budget // 3) // (8 * L * POOL) // 128 * 128)
    if FT >= F:
        FT = F                                 # single feature tile
    FP = _round_up(FT, 128)                    # vreg-aligned slab width
    NJ = _cdiv(F, FT)
    # NOTE: for extremely long L the banded structure of the folded weight
    # (only ~K nonzero rows per column) would additionally allow tiling x
    # along L; not needed at these sizes.

    # ---- folded conv+pool weight (hi/lo bf16 halves) ------------------------
    #   W[STRIDE*(POOL*s + p) + k,  j*POOL*FP + p*FP + (f - j*FT)] = w2[o, k]
    # for every kept output feature f = o*L2 + s, pool tap p, kernel tap k.
    f_i, p_i, k_i = jnp.meshgrid(jnp.arange(F), jnp.arange(POOL), jnp.arange(K),
                                 indexing="ij")
    o_i = f_i // L2
    s_i = f_i % L2
    rows = STRIDE * (POOL * s_i + p_i) + k_i
    cols = (f_i // FT) * (POOL * FP) + p_i * FP + (f_i % FT)
    w_full = jnp.zeros((L, NJ * POOL * FP), jnp.float32).at[
        rows.ravel(), cols.ravel()].set(w2[o_i, k_i].ravel())
    w_hi = w_full.astype(jnp.bfloat16)
    w_lo = (w_full - w_hi.astype(jnp.float32)).astype(jnp.bfloat16)

    # Bias in torch's channel-major flatten order, zero padded per tile.
    col = jnp.arange(NJ * FP)
    c_loc = col % FP
    f_of_col = (col // FP) * FT + c_loc
    valid = (c_loc < FT) & (f_of_col < F)
    b_arr = jnp.where(valid, b1[jnp.clip(f_of_col // L2, 0, C_OUT - 1)],
                      0.0).reshape(1, NJ * FP)

    # ---- row tile (fully-accounted VMEM working set) ------------------------
    fixed_bytes = w_block_bytes(FT) + 2 * 4 * FP            # weights + bias bufs
    per_row_bytes = (2 * 4 * L             # x block, double-buffered (f32)
                     + 2 * 4 * FT          # out block, double-buffered (f32)
                     + 2 * 2 * L           # x_hi / x_lo temporaries (bf16)
                     + 4 * POOL * FP       # conv accumulator (f32)
                     + 2 * 4 * FP)         # pooled / relu temporaries (f32)
    avail = max(ws_budget - fixed_bytes, 8 * per_row_bytes)
    budget_cap = max(8, min(1024, (avail // per_row_bytes) // 8 * 8))
    split_cap = max(8, _round_up(_cdiv(N, 2), 8))  # >=2 row steps (v7x 2 TCs)
    TN = min(budget_cap, split_cap, max(8, _round_up(N, 8)))
    NI = _cdiv(N, TN)

    out = pl.pallas_call(
        _brain_decode_kernel,
        out_shape=jax.ShapeDtypeStruct((N, F), jnp.float32),
        grid=(NI, NJ),
        in_specs=[
            pl.BlockSpec((TN, L), lambda i, j: (i, 0)),          # x rows
            pl.BlockSpec((L, POOL * FP), lambda i, j: (0, j)),   # W hi
            pl.BlockSpec((L, POOL * FP), lambda i, j: (0, j)),   # W lo
            pl.BlockSpec((1, FP), lambda i, j: (0, j)),          # bias
        ],
        out_specs=pl.BlockSpec((TN, FT), lambda i, j: (i, j)),
        compiler_params=pltpu.CompilerParams(
            dimension_semantics=("parallel", "arbitrary"),
            vmem_limit_bytes=vmem_limit),
    )(xf, w_hi, w_lo, b_arr)

    # Rows are already in torch's .view flatten order -> reshape is free.
    return out.reshape(B, C, F)


def _reference(x, weight, bias):
    """Pure-JAX reference of the PyTorch forward (conv -> relu -> maxpool)."""
    B, C, L = x.shape
    N = B * C
    xf = x.reshape(N, L)
    L1 = (L - K) // STRIDE + 1
    L2 = (L1 - POOL) // POOL + 1
    idx = (jnp.arange(L1) * STRIDE)[:, None] + jnp.arange(K)[None, :]
    patches = xf[:, idx]                                      # (N, L1, K)
    w2 = weight.reshape(C_OUT, K)
    conv = jnp.einsum('nlk,ok->nol', patches, w2,
                      precision=jax.lax.Precision.HIGHEST) + bias[None, :, None]
    out1 = jnp.maximum(conv, 0.0)                             # (N, C_OUT, L1)
    out2 = out1[:, :, :POOL * L2].reshape(N, C_OUT, L2, POOL).max(-1)
    return out2.reshape(B, C, C_OUT * L2)


if __name__ == "__main__":
    key = jax.random.PRNGKey(0)
    kx, kw, kb = jax.random.split(key, 3)

    # Conv1d(1, 8, kernel_size=10)-shaped parameters, shared across tests.
    weight = jax.random.normal(kw, (C_OUT, 1, K), dtype=jnp.float32) * 0.3
    bias = jax.random.normal(kb, (C_OUT,), dtype=jnp.float32) * 0.1

    # Primary small case, plus shapes that exercise partial row blocks
    # (N % TN != 0) and, on 64 MiB-VMEM parts, multiple feature tiles.
    cases = [(2, 4, 40), (3, 3, 52), (2, 5, 400)]
    for idx_case, (B, C, L) in enumerate(cases):
        kc = jax.random.fold_in(kx, idx_case)
        x = jax.random.normal(kc, (B, C, L), dtype=jnp.float32)

        out = jax.block_until_ready(brain_decode_conv(x, weight, bias))
        ref = _reference(x, weight, bias)

        L1 = (L - K) // STRIDE + 1
        L2 = (L1 - POOL) // POOL + 1
        assert out.shape == (B, C, C_OUT * L2), (out.shape, (B, C, C_OUT * L2))
        assert jnp.allclose(out, ref, atol=1e-3, rtol=1e-3), \
            f"mismatch vs reference for shape {(B, C, L)}"

    print("KERNEL_OK")
</pallas_src>

<mosaic_0001>
module attributes {stable_mosaic.version = 11 : i64} {
  func.func @_brain_decode_kernel(%arg0: i32, %arg1: i32, %arg2: memref<8x40xf32, #tpu.memory_space<vmem>>, %arg3: memref<40x384xbf16, #tpu.memory_space<vmem>>, %arg4: memref<40x384xbf16, #tpu.memory_space<vmem>>, %arg5: memref<1x128xf32, #tpu.memory_space<vmem>>, %arg6: memref<8x40xf32, #tpu.memory_space<vmem>>) attributes {dimension_semantics = [#tpu.dimension_semantics<parallel>, #tpu.dimension_semantics<arbitrary>], iteration_bounds = array<i64: 1, 1>, scalar_prefetch = 0 : i64, scratch_operands = 0 : i64, tpu.core_type = #tpu.core_type<tc>, window_params = [{transform_indices = @transform_0, window_bounds = array<i64: 8, 40>}, {transform_indices = @transform_1, window_bounds = array<i64: 40, 384>}, {transform_indices = @transform_2, window_bounds = array<i64: 40, 384>}, {transform_indices = @transform_3, window_bounds = array<i64: 1, 128>}, {transform_indices = @transform_4, window_bounds = array<i64: 8, 40>}]} {
    %c0 = arith.constant 0 : index
    %c0_0 = arith.constant 0 : index
    %0 = vector.load %arg2[%c0, %c0_0] : memref<8x40xf32, #tpu.memory_space<vmem>>, vector<8x40xf32>
    %1 = arith.truncf %0 : vector<8x40xf32> to vector<8x40xbf16>
    %2 = arith.extf %1 : vector<8x40xbf16> to vector<8x40xf32>
    %3 = arith.subf %0, %2 : vector<8x40xf32>
    %4 = arith.truncf %3 : vector<8x40xf32> to vector<8x40xbf16>
    %c0_1 = arith.constant 0 : index
    %c0_2 = arith.constant 0 : index
    %5 = vector.load %arg3[%c0_1, %c0_2] : memref<40x384xbf16, #tpu.memory_space<vmem>>, vector<40x384xbf16>
    %c0_3 = arith.constant 0 : index
    %c0_4 = arith.constant 0 : index
    %6 = vector.load %arg4[%c0_3, %c0_4] : memref<40x384xbf16, #tpu.memory_space<vmem>>, vector<40x384xbf16>
    %cst = arith.constant dense<0.000000e+00> : vector<8x384xf32>
    %7 = tpu.matmul %1, %5, %cst {dimension_numbers = #tpu.dot_dimension_numbers<[1], [0], [0], [1], [0, 0, 1, 1], [], []>} : vector<8x40xbf16>, vector<40x384xbf16>, vector<8x384xf32> -> vector<8x384xf32>
    %cst_5 = arith.constant dense<0.000000e+00> : vector<8x384xf32>
    %8 = tpu.matmul %1, %6, %cst_5 {dimension_numbers = #tpu.dot_dimension_numbers<[1], [0], [0], [1], [0, 0, 1, 1], [], []>} : vector<8x40xbf16>, vector<40x384xbf16>, vector<8x384xf32> -> vector<8x384xf32>
    %9 = arith.addf %7, %8 : vector<8x384xf32>
    %cst_6 = arith.constant dense<0.000000e+00> : vector<8x384xf32>
    %10 = tpu.matmul %4, %5, %cst_6 {dimension_numbers = #tpu.dot_dimension_numbers<[1], [0], [0], [1], [0, 0, 1, 1], [], []>} : vector<8x40xbf16>, vector<40x384xbf16>, vector<8x384xf32> -> vector<8x384xf32>
    %11 = arith.addf %9, %10 : vector<8x384xf32>
    %12 = vector.extract_strided_slice %11 {offsets = [0, 0], sizes = [8, 128], strides = [1, 1]} : vector<8x384xf32> to vector<8x128xf32>
    %13 = vector.extract_strided_slice %11 {offsets = [0, 128], sizes = [8, 128], strides = [1, 1]} : vector<8x384xf32> to vector<8x128xf32>
    %14 = arith.maximumf %12, %13 : vector<8x128xf32>
    %15 = vector.extract_strided_slice %11 {offsets = [0, 256], sizes = [8, 128], strides = [1, 1]} : vector<8x384xf32> to vector<8x128xf32>
    %16 = arith.maximumf %14, %15 : vector<8x128xf32>
    %c0_7 = arith.constant 0 : index
    %c0_8 = arith.constant 0 : index
    %17 = vector.load %arg5[%c0_7, %c0_8] : memref<1x128xf32, #tpu.memory_space<vmem>>, vector<1x128xf32>
    %18 = vector.broadcast %17 : vector<1x128xf32> to vector<8x128xf32>
    %19 = arith.addf %16, %18 : vector<8x128xf32>
    %cst_9 = arith.constant 0.000000e+00 : f32
    %20 = vector.broadcast %cst_9 : f32 to vector<8x128xf32>
    %21 = arith.maximumf %19, %20 : vector<8x128xf32>
    %22 = vector.extract_strided_slice %21 {offsets = [0, 0], sizes = [8, 40], strides = [1, 1]} : vector<8x128xf32> to vector<8x40xf32>
    %c0_10 = arith.constant 0 : index
    %c0_11 = arith.constant 0 : index
    %23 = vector.load %arg6[%c0_10, %c0_11] : memref<8x40xf32, #tpu.memory_space<vmem>>, vector<8x40xf32>
    tpu.vector_store %arg6[%c0_10, %c0_11], %22 {strides = array<i32>} : memref<8x40xf32, #tpu.memory_space<vmem>>, vector<8x40xf32>,
    return
  }
  func.func @transform_0(%arg0: i32, %arg1: i32) -> (i32, i32) {
    %c0_i32 = arith.constant 0 : i32
    %c0_i32_0 = arith.constant 0 : i32
    return %arg0, %c0_i32 : i32, i32
  }
  func.func @transform_1(%arg0: i32, %arg1: i32) -> (i32, i32) {
    %c0_i32 = arith.constant 0 : i32
    %c0_i32_0 = arith.constant 0 : i32
    return %c0_i32, %arg1 : i32, i32
  }
  func.func @transform_2(%arg0: i32, %arg1: i32) -> (i32, i32) {
    %c0_i32 = arith.constant 0 : i32
    %c0_i32_0 = arith.constant 0 : i32
    return %c0_i32, %arg1 : i32, i32
  }
  func.func @transform_3(%arg0: i32, %arg1: i32) -> (i32, i32) {
    %c0_i32 = arith.constant 0 : i32
    %c0_i32_0 = arith.constant 0 : i32
    return %c0_i32, %arg1 : i32, i32
  }
  func.func @transform_4(%arg0: i32, %arg1: i32) -> (i32, i32) {
    %c0_i32 = arith.constant 0 : i32
    return %arg0, %arg1 : i32, i32
  }
}

</mosaic_0001>

<llo_original>
// kernel: tpu_custom_call.1
$region0: #{tpu_custom_call.1}
  #allocation0 [shape = 'u32[]', space=smem, size = 0x4, offset = 0x4, fixed_abs, tag = 'smem constant byte address 0x4 - core index']
  #allocation1 [shape = 'u32[144,128]{1,0:T(1,128)}', space=vmem, size = 0x12000, scoped, tag = 'internal scratch']
  %s0 = inlined_call_operand.hbm [shape: f32[8,40], index: 0, kind: input, shape index: {}]
  %s1 = inlined_call_operand.hbm [shape: bf16[40,384], index: 1, kind: input, shape index: {}]
  %s2 = inlined_call_operand.hbm [shape: bf16[40,384], index: 2, kind: input, shape index: {}]
  %s3 = inlined_call_operand.vmem [shape: f32[1,128], index: 3, kind: input, shape index: {}]
  %s4 = inlined_call_operand.hbm [shape: f32[8,40], index: 4, kind: output, shape index: {}]
  %s5 = sld [smem:[#allocation0]]
  $region38: #{tpu_custom_call.1} parent=0
    _
  %s7 = ssub.s32 1, %s5
  %s8 = scalar_select 0, %s7, %s5
  $region1: #{tpu_custom_call.1} parent=0
    #allocation2 [shape = 'u8[4096]{0}', space=vmem, size = 0x1000, scoped, tag = 'input window, operand 0, single buffered']
    #allocation3 [shape = 's32[1]{0}', space=sflag, size = 0x4, scoped, tag = 'scoped memory for tpu_custom_call.1']
    #allocation4 [shape = 's32[1]{0}', space=sflag, size = 0x4, scoped, tag = 'scoped memory for tpu_custom_call.1']
    #allocation5 [shape = 'u8[30720]{0}', space=vmem, size = 0x7800, scoped, tag = 'input window, operand 1, single buffered']
    #allocation6 [shape = 's32[1]{0}', space=sflag, size = 0x4, scoped, tag = 'scoped memory for tpu_custom_call.1']
    #allocation7 [shape = 'u8[30720]{0}', space=vmem, size = 0x7800, scoped, tag = 'input window, operand 2, single buffered']
    #allocation8 [shape = 'u8[4096]{0}', space=vmem, size = 0x1000, scoped, tag = 'output window, operand 0, single buffered']
    %9 = vsyncpa [#allocation3], 0
    %10 = vsyncpa [#allocation6], 0
    %11 = vsyncpa [#allocation4], 0
    // Predicated region
    $region2: #{tpu_custom_call.1} parent=1 // pred_check
      _
    $region3: #{tpu_custom_call.1} parent=1 // pred_check_branch
      %13 = sbr.rel (0) target = $region5
    $region4: #{tpu_custom_call.1} parent=1 // pred_region
      %s15 = ssub.s32 128, 128
      %16 = vsyncadd [#allocation3], %s15
      %s18 = sshll.u32 [#allocation2], 4
      %s19 = int_to_ptr.vmem [resolvable:$true] %s18
      %21 = dma.hbm_to_vmem [thread:$0]  %s0, 128, %s19, [#allocation3]
    $region5: #{tpu_custom_call.1} parent=1 // pred_fallthru
      _
    // Predicated region
    $region6: #{tpu_custom_call.1} parent=1 // pred_check
      _
    $region7: #{tpu_custom_call.1} parent=1 // pred_check_branch
      %23 = sbr.rel (0) target = $region9
    $region8: #{tpu_custom_call.1} parent=1 // pred_region
      %s25 = ssub.s32 960, 960
      %26 = vsyncadd [#allocation6], %s25
      %s27 = sshll.u32 [#allocation5], 4
      %s28 = int_to_ptr.vmem [resolvable:$true] %s27
      %33 = dma.hbm_to_vmem [thread:$0]  %s1, 960, %s28, [#allocation6], 192, 192, 12
    $region9: #{tpu_custom_call.1} parent=1 // pred_fallthru
      _
    // Predicated region
    $region10: #{tpu_custom_call.1} parent=1 // pred_check
      _
    $region11: #{tpu_custom_call.1} parent=1 // pred_check_branch
      %35 = sbr.rel (0) target = $region13
    $region12: #{tpu_custom_call.1} parent=1 // pred_region
      %s37 = ssub.s32 960, 960
      %38 = vsyncadd [#allocation6], %s37
      %s39 = sshll.u32 [#allocation7], 4
      %s40 = int_to_ptr.vmem [resolvable:$true] %s39
      %45 = dma.hbm_to_vmem [thread:$0]  %s2, 960, %s40, [#allocation6], 192, 192, 12
    $region13: #{tpu_custom_call.1} parent=1 // pred_fallthru
      _
    // Predicated region
    $region14: #{tpu_custom_call.1} parent=1 // pred_check
      _
    $region15: #{tpu_custom_call.1} parent=1 // pred_check_branch
      %47 = sbr.rel (0) target = $region17
    $region16: #{tpu_custom_call.1} parent=1 // pred_region
      _
    $region17: #{tpu_custom_call.1} parent=1 // pred_fallthru
      _
    // Predicated region
    $region18: #{tpu_custom_call.1} parent=1 // pred_check
      _
    $region19: #{tpu_custom_call.1} parent=1 // pred_check_branch
      %49 = sbr.rel (0) target = $region21
    $region20: #{tpu_custom_call.1} parent=1 // pred_region
      %50 = dma.done [#allocation3], 128
    $region21: #{tpu_custom_call.1} parent=1 // pred_fallthru
      _
    // Predicated region
    $region22: #{tpu_custom_call.1} parent=1 // pred_check
      _
    $region23: #{tpu_custom_call.1} parent=1 // pred_check_branch
      %52 = sbr.rel (0) target = $region25
    $region24: #{tpu_custom_call.1} parent=1 // pred_region
      %53 = dma.done [#allocation6], 960
    $region25: #{tpu_custom_call.1} parent=1 // pred_fallthru
      _
    // Predicated region
    $region26: #{tpu_custom_call.1} parent=1 // pred_check
      _
    $region27: #{tpu_custom_call.1} parent=1 // pred_check_branch
      %55 = sbr.rel (0) target = $region29
    $region28: #{tpu_custom_call.1} parent=1 // pred_region
      %56 = dma.done [#allocation6], 960
    $region29: #{tpu_custom_call.1} parent=1 // pred_fallthru
      _
    %v58 = vld [vmem:[#allocation2] sm:$0xff]
    %v59 = vpack.c.bf16 %v58, %v58
    %v60 = vunpack.c.l.bf16 %v59
    %v61 = vsub.f32 %v58, %v60
    %v62 = vpack.c.bf16 %v61, %v61
    %v63 = vld [vmem:[#allocation5] sm:$0xff]
    %v64 = vld [vmem:[#allocation5 + $0x8] sm:$0xf]
    %v65 = vld [vmem:[#allocation5 + $0xc] sm:$0xff]
    %v66 = vld [vmem:[#allocation5 + $0x14] sm:$0xf]
    %v67 = vld [vmem:[#allocation5 + $0x18] sm:$0xff]
    %v68 = vld [vmem:[#allocation5 + $0x20] sm:$0xf]
    %v69 = vld [vmem:[#allocation5 + $0x24] sm:$0xff]
    %v70 = vld [vmem:[#allocation5 + $0x2c] sm:$0xf]
    %v71 = vld [vmem:[#allocation5 + $0x30] sm:$0xff]
    %v72 = vld [vmem:[#allocation5 + $0x38] sm:$0xf]
    %v73 = vld [vmem:[#allocation7] sm:$0xff]
    %v74 = vld [vmem:[#allocation7 + $0x8] sm:$0xf]
    %v75 = vld [vmem:[#allocation7 + $0xc] sm:$0xff]
    %v76 = vld [vmem:[#allocation7 + $0x14] sm:$0xf]
    %v77 = vld [vmem:[#allocation7 + $0x18] sm:$0xff]
    %v78 = vld [vmem:[#allocation7 + $0x20] sm:$0xf]
    %v79 = vld [vmem:[#allocation7 + $0x24] sm:$0xff]
    %v80 = vld [vmem:[#allocation7 + $0x2c] sm:$0xf]
    %v81 = vld [vmem:[#allocation7 + $0x30] sm:$0xff]
    %v82 = vld [vmem:[#allocation7 + $0x38] sm:$0xf]
    %v93 = vunpack.c.l.b16 %v73
    %v94 = vunpack.c.h.b16 %v73
    %v95 = vunpack.c.l.b16 %v74
    %v96 = vunpack.c.l.b16 %v75
    %v97 = vunpack.c.h.b16 %v75
    %v98 = vunpack.c.l.b16 %v76
    %v99 = vunpack.c.l.b16 %v77
    %v100 = vunpack.c.h.b16 %v77
    %v101 = vunpack.c.l.b16 %v78
    %v102 = vunpack.c.l.b16 %v79
    %v103 = vunpack.c.h.b16 %v79
    %v104 = vunpack.c.l.b16 %v80
    %v105 = vunpack.c.l.b16 %v81
    %v106 = vunpack.c.h.b16 %v81
    %v107 = vunpack.c.l.b16 %v82
    %v108 = vpack.c.b16 %v96, %v93
    %v109 = vpack.c.b16 %v97, %v94
    %v110 = vpack.c.b16 %v98, %v95
    %v111 = vpack.c.b16 %v102, %v99
    %v112 = vpack.c.b16 %v103, %v100
    %v113 = vpack.c.b16 %v104, %v101
    %v114 = vpack.c.b16 %v105, %v105
    %v115 = vpack.c.b16 %v106, %v106
    %v116 = vpack.c.b16 %v107, %v107
    %vm123 = vcmask 326656
    %v125 = vsel %vm123, %v59, 0
    %vm127 = vcmask 1043456
    %v129 = vsel %vm127, %v114, 0
    %v132 = vsel %vm127, %v115, 0
    %v135 = vsel %vm127, %v116, 0
    %137 = vmatprep.subr.bf16.mxu0 %v109
    %138 = vmatpush1.bf16.msra.mxu0 %v108
    %139 = vmatprep.subr.bf16.mxu0 %v112
    %140 = vmatpush1.bf16.msra.mxu0 %v111
    %141 = vmatprep.subr.bf16.mxu0 %v132
    %142 = vmatpush1.bf16.msra.mxu0 %v129
    %143 = vmatprep.subr.bf16.mxu0 0
    %144 = vmatpush1.bf16.msra.mxu0 0
    %145 = vmatprep.subr.bf16.mxu0 0
    %146 = vmatpush1.bf16.msra.mxu0 0
    %147 = vmatprep.subr.bf16.mxu0 0
    %148 = vmatpush1.bf16.msra.mxu0 0
    %149 = vmatprep.subr.bf16.mxu0 0
    %150 = vmatpush1.bf16.msra.mxu0 0
    %151 = vmatprep.subr.bf16.mxu0 0
    %152 = vmatpush1.bf16.msra.mxu0 0
    %153 = vmatprep.subr.bf16.mxu0 0
    %154 = vmatpush1.bf16.msra.mxu0 0
    %155 = vmatprep.subr.bf16.mxu0 0
    %156 = vmatpush1.bf16.msra.mxu0 0
    %157 = vmatprep.subr.bf16.mxu0 0
    %158 = vmatpush1.bf16.msra.mxu0 0
    %159 = vmatprep.subr.bf16.mxu0 0
    %160 = vmatpush1.bf16.msra.mxu0 0
    %161 = vmatprep.subr.bf16.mxu0 0
    %162 = vmatpush1.bf16.msra.mxu0 0
    %163 = vmatprep.subr.bf16.mxu0 0
    %164 = vmatpush1.bf16.msra.mxu0 0
    %165 = vmatprep.subr.bf16.mxu0 0
    %166 = vmatpush1.bf16.msra.mxu0 0
    %167 = vmatprep.subr.bf16.mxu0 0
    %168 = vmatpush1.bf16.msra.mxu0 0
    %169 = vmatprep.mubr.bf16.mxu0 0
    %170 = vmatmul.mubr.bf16.gmra.mrb[0].mxu0 %v125
    %v171 = vpop.f32.mrb[0].mxu0
    %v172 = vadd.f32 0.0, %v171
    %v173 = vpop.f32.mrb[0].mxu0
    %v174 = vadd.f32 0.0, %v173
    %v175 = vpop.f32.mrb[0].mxu0
    %v176 = vpop.f32.mrb[0].mxu0
    %177 = vdwg.mxu0
    %178 = vmatprep.subr.bf16.mxu0 0
    %179 = vmatpush1.bf16.msra.mxu0 %v110
    %180 = vmatprep.subr.bf16.mxu0 0
    %181 = vmatpush1.bf16.msra.mxu0 %v113
    %182 = vmatprep.subr.bf16.mxu0 0
    %183 = vmatpush1.bf16.msra.mxu0 %v135
    %184 = vmatprep.subr.bf16.mxu0 0
    %185 = vmatpush1.bf16.msra.mxu0 0
    %186 = vmatprep.subr.bf16.mxu0 0
    %187 = vmatpush1.bf16.msra.mxu0 0
    %188 = vmatprep.subr.bf16.mxu0 0
    %189 = vmatpush1.bf16.msra.mxu0 0
    %190 = vmatprep.subr.bf16.mxu0 0
    %191 = vmatpush1.bf16.msra.mxu0 0
    %192 = vmatprep.subr.bf16.mxu0 0
    %193 = vmatpush1.bf16.msra.mxu0 0
    %194 = vmatprep.subr.bf16.mxu0 0
    %195 = vmatpush1.bf16.msra.mxu0 0
    %196 = vmatprep.subr.bf16.mxu0 0
    %197 = vmatpush1.bf16.msra.mxu0 0
    %198 = vmatprep.subr.bf16.mxu0 0
    %199 = vmatpush1.bf16.msra.mxu0 0
    %200 = vmatprep.subr.bf16.mxu0 0
    %201 = vmatpush1.bf16.msra.mxu0 0
    %202 = vmatprep.subr.bf16.mxu0 0
    %203 = vmatpush1.bf16.msra.mxu0 0
    %204 = vmatprep.subr.bf16.mxu0 0
    %205 = vmatpush1.bf16.msra.mxu0 0
    %206 = vmatprep.subr.bf16.mxu0 0
    %207 = vmatpush1.bf16.msra.mxu0 0
    %208 = vmatprep.subr.bf16.mxu0 0
    %209 = vmatpush1.bf16.msra.mxu0 0
    %210 = vmatprep.mubr.bf16.mxu0 0
    %211 = vmatmul.mubr.bf16.gmra.mrb[0].mxu0 %v125
    %v212 = vpop.f32.mrb[0].mxu0
    %v213 = vadd.f32 0.0, %v212
    %v214 = vpop.f32.mrb[0].mxu0
    %v215 = vpop.f32.mrb[0].mxu0
    %v216 = vpop.f32.mrb[0].mxu0
    %217 = vdwg.mxu0
    %v228 = vunpack.c.l.b16 %v63
    %v229 = vunpack.c.h.b16 %v63
    %v230 = vunpack.c.l.b16 %v64
    %v231 = vunpack.c.l.b16 %v65
    %v232 = vunpack.c.h.b16 %v65
    %v233 = vunpack.c.l.b16 %v66
    %v234 = vunpack.c.l.b16 %v67
    %v235 = vunpack.c.h.b16 %v67
    %v236 = vunpack.c.l.b16 %v68
    %v237 = vunpack.c.l.b16 %v69
    %v238 = vunpack.c.h.b16 %v69
    %v239 = vunpack.c.l.b16 %v70
    %v240 = vunpack.c.l.b16 %v71
    %v241 = vunpack.c.h.b16 %v71
    %v242 = vunpack.c.l.b16 %v72
    %v243 = vpack.c.b16 %v231, %v228
    %v244 = vpack.c.b16 %v232, %v229
    %v245 = vpack.c.b16 %v233, %v230
    %v246 = vpack.c.b16 %v237, %v234
    %v247 = vpack.c.b16 %v238, %v235
    %v248 = vpack.c.b16 %v239, %v236
    %v249 = vpack.c.b16 %v240, %v240
    %v250 = vpack.c.b16 %v241, %v241
    %v251 = vpack.c.b16 %v242, %v242
    %v259 = vsel %vm127, %v249, 0
    %v262 = vsel %vm127, %v250, 0
    %v265 = vsel %vm127, %v251, 0
    %267 = vmatprep.subr.bf16.mxu0 %v244
    %268 = vmatpush1.bf16.msra.mxu0 %v243
    %269 = vmatprep.subr.bf16.mxu0 %v247
    %270 = vmatpush1.bf16.msra.mxu0 %v246
    %271 = vmatprep.subr.bf16.mxu0 %v262
    %272 = vmatpush1.bf16.msra.mxu0 %v259
    %273 = vmatprep.subr.bf16.mxu0 0
    %274 = vmatpush1.bf16.msra.mxu0 0
    %275 = vmatprep.subr.bf16.mxu0 0
    %276 = vmatpush1.bf16.msra.mxu0 0
    %277 = vmatprep.subr.bf16.mxu0 0
    %278 = vmatpush1.bf16.msra.mxu0 0
    %279 = vmatprep.subr.bf16.mxu0 0
    %280 = vmatpush1.bf16.msra.mxu0 0
    %281 = vmatprep.subr.bf16.mxu0 0
    %282 = vmatpush1.bf16.msra.mxu0 0
    %283 = vmatprep.subr.bf16.mxu0 0
    %284 = vmatpush1.bf16.msra.mxu0 0
    %285 = vmatprep.subr.bf16.mxu0 0
    %286 = vmatpush1.bf16.msra.mxu0 0
    %287 = vmatprep.subr.bf16.mxu0 0
    %288 = vmatpush1.bf16.msra.mxu0 0
    %289 = vmatprep.subr.bf16.mxu0 0
    %290 = vmatpush1.bf16.msra.mxu0 0
    %291 = vmatprep.subr.bf16.mxu0 0
    %292 = vmatpush1.bf16.msra.mxu0 0
    %293 = vmatprep.subr.bf16.mxu0 0
    %294 = vmatpush1.bf16.msra.mxu0 0
    %295 = vmatprep.subr.bf16.mxu0 0
    %296 = vmatpush1.bf16.msra.mxu0 0
    %297 = vmatprep.subr.bf16.mxu0 0
    %298 = vmatpush1.bf16.msra.mxu0 0
    %299 = vmatprep.mubr.bf16.mxu0 0
    %300 = vmatmul.mubr.bf16.gmra.mrb[0].mxu0 %v125
    %v301 = vpop.f32.mrb[0].mxu0
    %v302 = vadd.f32 %v172, %v301
    %v303 = vpop.f32.mrb[0].mxu0
    %v304 = vadd.f32 %v174, %v303
    %v305 = vpop.f32.mrb[0].mxu0
    %v306 = vpop.f32.mrb[0].mxu0
    %307 = vdwg.mxu0
    %308 = vmatprep.subr.bf16.mxu0 0
    %309 = vmatpush1.bf16.msra.mxu0 %v245
    %310 = vmatprep.subr.bf16.mxu0 0
    %311 = vmatpush1.bf16.msra.mxu0 %v248
    %312 = vmatprep.subr.bf16.mxu0 0
    %313 = vmatpush1.bf16.msra.mxu0 %v265
    %314 = vmatprep.subr.bf16.mxu0 0
    %315 = vmatpush1.bf16.msra.mxu0 0
    %316 = vmatprep.subr.bf16.mxu0 0
    %317 = vmatpush1.bf16.msra.mxu0 0
    %318 = vmatprep.subr.bf16.mxu0 0
    %319 = vmatpush1.bf16.msra.mxu0 0
    %320 = vmatprep.subr.bf16.mxu0 0
    %321 = vmatpush1.bf16.msra.mxu0 0
    %322 = vmatprep.subr.bf16.mxu0 0
    %323 = vmatpush1.bf16.msra.mxu0 0
    %324 = vmatprep.subr.bf16.mxu0 0
    %325 = vmatpush1.bf16.msra.mxu0 0
    %326 = vmatprep.subr.bf16.mxu0 0
    %327 = vmatpush1.bf16.msra.mxu0 0
    %328 = vmatprep.subr.bf16.mxu0 0
    %329 = vmatpush1.bf16.msra.mxu0 0
    %330 = vmatprep.subr.bf16.mxu0 0
    %331 = vmatpush1.bf16.msra.mxu0 0
    %332 = vmatprep.subr.bf16.mxu0 0
    %333 = vmatpush1.bf16.msra.mxu0 0
    %334 = vmatprep.subr.bf16.mxu0 0
    %335 = vmatpush1.bf16.msra.mxu0 0
    %336 = vmatprep.subr.bf16.mxu0 0
    %337 = vmatpush1.bf16.msra.mxu0 0
    %338 = vmatprep.subr.bf16.mxu0 0
    %339 = vmatpush1.bf16.msra.mxu0 0
    %340 = vmatprep.mubr.bf16.mxu0 0
    %341 = vmatmul.mubr.bf16.gmra.mrb[0].mxu0 %v125
    %v342 = vpop.f32.mrb[0].mxu0
    %v343 = vadd.f32 %v213, %v342
    %v344 = vpop.f32.mrb[0].mxu0
    %v345 = vpop.f32.mrb[0].mxu0
    %v346 = vpop.f32.mrb[0].mxu0
    %347 = vdwg.mxu0
    %v349 = vsel %vm123, %v62, 0
    %351 = vmatprep.subr.bf16.mxu0 %v244
    %352 = vmatpush1.bf16.msra.mxu0 %v243
    %353 = vmatprep.subr.bf16.mxu0 %v247
    %354 = vmatpush1.bf16.msra.mxu0 %v246
    %355 = vmatprep.subr.bf16.mxu0 %v262
    %356 = vmatpush1.bf16.msra.mxu0 %v259
    %357 = vmatprep.subr.bf16.mxu0 0
    %358 = vmatpush1.bf16.msra.mxu0 0
    %359 = vmatprep.subr.bf16.mxu0 0
    %360 = vmatpush1.bf16.msra.mxu0 0
    %361 = vmatprep.subr.bf16.mxu0 0
    %362 = vmatpush1.bf16.msra.mxu0 0
    %363 = vmatprep.subr.bf16.mxu0 0
    %364 = vmatpush1.bf16.msra.mxu0 0
    %365 = vmatprep.subr.bf16.mxu0 0
    %366 = vmatpush1.bf16.msra.mxu0 0
    %367 = vmatprep.subr.bf16.mxu0 0
    %368 = vmatpush1.bf16.msra.mxu0 0
    %369 = vmatprep.subr.bf16.mxu0 0
    %370 = vmatpush1.bf16.msra.mxu0 0
    %371 = vmatprep.subr.bf16.mxu0 0
    %372 = vmatpush1.bf16.msra.mxu0 0
    %373 = vmatprep.subr.bf16.mxu0 0
    %374 = vmatpush1.bf16.msra.mxu0 0
    %375 = vmatprep.subr.bf16.mxu0 0
    %376 = vmatpush1.bf16.msra.mxu0 0
    %377 = vmatprep.subr.bf16.mxu0 0
    %378 = vmatpush1.bf16.msra.mxu0 0
    %379 = vmatprep.subr.bf16.mxu0 0
    %380 = vmatpush1.bf16.msra.mxu0 0
    %381 = vmatprep.subr.bf16.mxu0 0
    %382 = vmatpush1.bf16.msra.mxu0 0
    %383 = vmatprep.mubr.bf16.mxu0 0
    %384 = vmatmul.mubr.bf16.gmra.mrb[0].mxu0 %v349
    %v385 = vpop.f32.mrb[0].mxu0
    %v386 = vadd.f32 0.0, %v385
    %v387 = vpop.f32.mrb[0].mxu0
    %v388 = vadd.f32 0.0, %v387
    %v389 = vpop.f32.mrb[0].mxu0
    %v390 = vpop.f32.mrb[0].mxu0
    %391 = vdwg.mxu0
    %392 = vmatprep.subr.bf16.mxu0 0
    %393 = vmatpush1.bf16.msra.mxu0 %v245
    %394 = vmatprep.subr.bf16.mxu0 0
    %395 = vmatpush1.bf16.msra.mxu0 %v248
    %396 = vmatprep.subr.bf16.mxu0 0
    %397 = vmatpush1.bf16.msra.mxu0 %v265
    %398 = vmatprep.subr.bf16.mxu0 0
    %399 = vmatpush1.bf16.msra.mxu0 0
    %400 = vmatprep.subr.bf16.mxu0 0
    %401 = vmatpush1.bf16.msra.mxu0 0
    %402 = vmatprep.subr.bf16.mxu0 0
    %403 = vmatpush1.bf16.msra.mxu0 0
    %404 = vmatprep.subr.bf16.mxu0 0
    %405 = vmatpush1.bf16.msra.mxu0 0
    %406 = vmatprep.subr.bf16.mxu0 0
    %407 = vmatpush1.bf16.msra.mxu0 0
    %408 = vmatprep.subr.bf16.mxu0 0
    %409 = vmatpush1.bf16.msra.mxu0 0
    %410 = vmatprep.subr.bf16.mxu0 0
    %411 = vmatpush1.bf16.msra.mxu0 0
    %412 = vmatprep.subr.bf16.mxu0 0
    %413 = vmatpush1.bf16.msra.mxu0 0
    %414 = vmatprep.subr.bf16.mxu0 0
    %415 = vmatpush1.bf16.msra.mxu0 0
    %416 = vmatprep.subr.bf16.mxu0 0
    %417 = vmatpush1.bf16.msra.mxu0 0
    %418 = vmatprep.subr.bf16.mxu0 0
    %419 = vmatpush1.bf16.msra.mxu0 0
    %420 = vmatprep.subr.bf16.mxu0 0
    %421 = vmatpush1.bf16.msra.mxu0 0
    %422 = vmatprep.subr.bf16.mxu0 0
    %423 = vmatpush1.bf16.msra.mxu0 0
    %424 = vmatprep.mubr.bf16.mxu0 0
    %425 = vmatmul.mubr.bf16.gmra.mrb[0].mxu0 %v349
    %v426 = vpop.f32.mrb[0].mxu0
    %v427 = vadd.f32 0.0, %v426
    %v428 = vpop.f32.mrb[0].mxu0
    %v429 = vpop.f32.mrb[0].mxu0
    %v430 = vpop.f32.mrb[0].mxu0
    %431 = vdwg.mxu0
    %v432 = vadd.f32 %v302, %v386
    %v433 = vadd.f32 %v304, %v388
    %v434 = vadd.f32 %v343, %v427
    %v435 = vmax.f32 %v432, %v433
    %v436 = vmax.f32 %v435, %v434
    %v437 = vld [vmem:[%s3] sm:$0x1]
    %v439 = vlaneseq
    %v440 = vshrl.u32 %v439, 7
    %v441 = vsub.s32 0, %v440
    %v442 = vrot.slane %v437, %v441
    %v444 = vadd.f32 %v436, %v442
    %v445 = vmax.f32 %v444, 0.0
    %446 = vst.msk [vmem:[#allocation8] sm:$0xff] %vm123, %v445
    // Predicated region
    $region30: #{tpu_custom_call.1} parent=1 // pred_check
      _
    $region31: #{tpu_custom_call.1} parent=1 // pred_check_branch
      %448 = sbr.rel (0) target = $region33
    $region32: #{tpu_custom_call.1} parent=1 // pred_region
      %s450 = ssub.s32 128, 128
      %451 = vsyncadd [#allocation4], %s450
      %s453 = sshll.u32 [#allocation8], 4
      %s454 = int_to_ptr.vmem [resolvable:$true] %s453
      %456 = dma.vmem_to_hbm [thread:$0]  %s454, 128, %s4, [#allocation4]
    $region33: #{tpu_custom_call.1} parent=1 // pred_fallthru
      _
    // Predicated region
    $region34: #{tpu_custom_call.1} parent=1 // pred_check
      _
    $region35: #{tpu_custom_call.1} parent=1 // pred_check_branch
      %458 = sbr.rel (0) target = $region37
    $region36: #{tpu_custom_call.1} parent=1 // pred_region
      %459 = dma.done [#allocation4], 128
    $region37: #{tpu_custom_call.1} parent=1 // pred_fallthru
      _
    %460 = vsyncpa [#allocation3], 1
    %461 = vsyncpa [#allocation6], 1
    %462 = vsyncpa [#allocation4], 1

</llo_original>
